<compile_context>
chip_gen: v7x
topology: tpu7x:2x2x1
jax: 0.10.0
libtpu: 0.0.40
codegen_flags: <defaults>
</compile_context>

<pallas_src>
import functools
import math

import jax
import jax.numpy as jnp
from jax import lax
from jax.experimental import pallas as pl
from jax.experimental.pallas import tpu as pltpu

# Hash / salt constants (uint32).
_MIX1 = 0x9E3779B1      # golden-ratio multiplier for the row coordinate
_MIX2 = 0x85EBCA77      # multiplier for the column / channel key
_FMIX1 = 0x85EBCA6B     # murmur3 fmix32 constants
_FMIX2 = 0xC2B2AE35
_S_SALT = 0x243F6A88    # stream salt for scalar channels
_V_SALT = 0xB7E15163    # stream salt for vector channels

# Conservative per-step VMEM budget (double-buffered in+out) so the same
# tiling fits v5e's 16 MiB scoped default, v6e's 32 MiB and v7x's 32-of-64.
_VMEM_BUDGET_BYTES = 6 * 1024 * 1024


def _keep_params(drop_rate):
    keep = 1.0 - float(drop_rate)
    # 24-bit integer threshold: drop_rate == 0 -> thresh = 2^24 -> always keep.
    return int(round(keep * (1 << 24))), 1.0 / keep


def _choose_tile(rows, row_bytes):
    """Pick a row-block size: multiple of 8 (or full extent), VMEM-bounded."""
    cap = _VMEM_BUDGET_BYTES // (4 * max(row_bytes, 1))   # 2 buffers x (in+out)
    cap = max(8, min(2048, cap - (cap % 8)))
    if rows <= cap and rows < 512:
        return rows, 1                       # tiny: single full-extent block
    bt_target = min(cap, 512)
    for cand in range(bt_target - (bt_target % 8), 7, -8):
        if rows % cand == 0:                 # clean multiple-of-8 divisor
            return cand, rows // cand
    if rows <= cap:
        return rows, 1                       # no clean divisor, still fits
    # TODO(synk): ragged tail relies on Pallas masking of the final partial block.
    return bt_target, pl.cdiv(rows, bt_target)


# ---------------------------------------------------------------------------
# Kernels
# ---------------------------------------------------------------------------
def _keep_mask(row0, seed_u32, colkey_u32, shape, thresh):
    """Bernoulli(keep) mask from a counter-based hash of (row, col-key, seed)."""
    rows = (lax.broadcasted_iota(jnp.int32, shape, 0) + row0).astype(jnp.uint32)
    h = rows * jnp.uint32(_MIX1)
    h = h ^ (colkey_u32 * jnp.uint32(_MIX2))
    h = h ^ seed_u32
    h = h ^ (h >> 16)
    h = h * jnp.uint32(_FMIX1)
    h = h ^ (h >> 13)
    h = h * jnp.uint32(_FMIX2)
    h = h ^ (h >> 16)
    return (h >> 8) < jnp.uint32(thresh)


def _apply_dropout(row0, seed_u32, grp_ref, x_ref, o_ref, thresh, inv_keep, salt):
    colkey = grp_ref[...].astype(jnp.uint32)         # (1, N) lane/channel keys
    keep = _keep_mask(row0, seed_u32 ^ jnp.uint32(salt), colkey,
                      x_ref.shape, thresh)
    x = x_ref[...]
    # Multiply in the input dtype (bf16 stays bf16 on v6e/v7x).
    o_ref[...] = jnp.where(keep, x * inv_keep, 0.0).astype(o_ref.dtype)


def _single_dropout_kernel(seed_ref, grp_ref, x_ref, o_ref, *,
                           thresh, inv_keep, block_rows, salt):
    row0 = pl.program_id(0) * block_rows
    seed_u32 = seed_ref[0].astype(jnp.uint32)
    _apply_dropout(row0, seed_u32, grp_ref, x_ref, o_ref, thresh, inv_keep, salt)


def _fused_dropout_kernel(seed_ref, sgrp_ref, vgrp_ref, s_ref, v_ref,
                          so_ref, vo_ref, *, thresh, inv_keep, block_rows):
    row0 = pl.program_id(0) * block_rows
    seed_u32 = seed_ref[0].astype(jnp.uint32)
    _apply_dropout(row0, seed_u32, sgrp_ref, s_ref, so_ref, thresh, inv_keep, _S_SALT)
    _apply_dropout(row0, seed_u32, vgrp_ref, v_ref, vo_ref, thresh, inv_keep, _V_SALT)


# ---------------------------------------------------------------------------
# pallas_call wrappers
# ---------------------------------------------------------------------------
def _call_single(x2d, grp, drop_rate, seed, salt):
    rows, n = x2d.shape
    bt, grid = _choose_tile(rows, n * x2d.dtype.itemsize)
    thresh, inv_keep = _keep_params(drop_rate)
    seed_arr = jnp.asarray([seed], jnp.int32)
    kern = functools.partial(_single_dropout_kernel, thresh=thresh,
                             inv_keep=inv_keep, block_rows=bt, salt=salt)
    return pl.pallas_call(
        kern,
        out_shape=jax.ShapeDtypeStruct((rows, n), x2d.dtype),
        grid_spec=pltpu.PrefetchScalarGridSpec(
            num_scalar_prefetch=1,
            grid=(grid,),
            in_specs=[pl.BlockSpec((1, n), lambda i, seed: (0, 0)),
                      pl.BlockSpec((bt, n), lambda i, seed: (i, 0))],
            out_specs=pl.BlockSpec((bt, n), lambda i, seed: (i, 0)),
        ),
        compiler_params=pltpu.CompilerParams(
            dimension_semantics=("parallel",)),
    )(seed_arr, grp, x2d)


def _scalar_dropout(s, drop_rate, seed):
    rows, n = math.prod(s.shape[:-1]), s.shape[-1]
    s2 = s.reshape(rows, n)                              # free contiguous view
    grp = jnp.arange(n, dtype=jnp.int32)[None, :]        # per-element keys
    out = _call_single(s2, grp, drop_rate, seed, _S_SALT)
    return out.reshape(s.shape)


def _vector_dropout(v, drop_rate, seed):
    rows = math.prod(v.shape[:-2])
    c, d = v.shape[-2], v.shape[-1]
    v2 = v.reshape(rows, c * d)                          # free contiguous view
    grp = jnp.repeat(jnp.arange(c, dtype=jnp.int32), d)[None, :]  # lane -> channel
    out = _call_single(v2, grp, drop_rate, seed, _V_SALT)
    return out.reshape(v.shape)


def _fused_dropout(s, v, drop_rate, seed):
    rows, ns = math.prod(s.shape[:-1]), s.shape[-1]
    c, d = v.shape[-2], v.shape[-1]
    nv = c * d
    s2 = s.reshape(rows, ns)
    v2 = v.reshape(rows, nv)
    sgrp = jnp.arange(ns, dtype=jnp.int32)[None, :]
    vgrp = jnp.repeat(jnp.arange(c, dtype=jnp.int32), d)[None, :]

    row_bytes = ns * s.dtype.itemsize + nv * v.dtype.itemsize
    bt, grid = _choose_tile(rows, row_bytes)
    thresh, inv_keep = _keep_params(drop_rate)
    seed_arr = jnp.asarray([seed], jnp.int32)
    kern = functools.partial(_fused_dropout_kernel, thresh=thresh,
                             inv_keep=inv_keep, block_rows=bt)
    so, vo = pl.pallas_call(
        kern,
        out_shape=(jax.ShapeDtypeStruct((rows, ns), s.dtype),
                   jax.ShapeDtypeStruct((rows, nv), v.dtype)),
        grid_spec=pltpu.PrefetchScalarGridSpec(
            num_scalar_prefetch=1,
            grid=(grid,),
            in_specs=[pl.BlockSpec((1, ns), lambda i, seed: (0, 0)),
                      pl.BlockSpec((1, nv), lambda i, seed: (0, 0)),
                      pl.BlockSpec((bt, ns), lambda i, seed: (i, 0)),
                      pl.BlockSpec((bt, nv), lambda i, seed: (i, 0))],
            out_specs=[pl.BlockSpec((bt, ns), lambda i, seed: (i, 0)),
                       pl.BlockSpec((bt, nv), lambda i, seed: (i, 0))],
        ),
        compiler_params=pltpu.CompilerParams(
            dimension_semantics=("parallel",)),
    )(seed_arr, sgrp, vgrp, s2, v2)
    return so.reshape(s.shape), vo.reshape(v.shape)


# ---------------------------------------------------------------------------
# Public entry point (forward of Flexpert-Design `Dropout`)
# ---------------------------------------------------------------------------
def gvp_dropout(x, drop_rate, *, seed=0, training=True):
    """x: single array (scalar channels) or tuple (s, V) with V shaped (..., Cv, 3)."""
    drop_rate = float(drop_rate)
    if not 0.0 <= drop_rate < 1.0:
        raise ValueError("drop_rate must be in [0, 1)")
    if not training:
        return x
    if isinstance(x, (tuple, list)):
        s, v = x
        if v is None:                                   # _VDropout(None) -> None
            return (_scalar_dropout(s, drop_rate, seed), None)
        if math.prod(s.shape[:-1]) == math.prod(v.shape[:-2]):
            return _fused_dropout(s, v, drop_rate, seed)   # one launch (common case)
        return (_scalar_dropout(s, drop_rate, seed),
                _vector_dropout(v, drop_rate, seed))
    return _scalar_dropout(x, drop_rate, seed)


if __name__ == "__main__":
    B, L, Cs, Cv = 2, 8, 32, 4
    key = jax.random.PRNGKey(0)
    ks, kv = jax.random.split(key)
    s = jax.random.normal(ks, (B, L, Cs), dtype=jnp.float32)
    v = jax.random.normal(kv, (B, L, Cv, 3), dtype=jnp.float32)

    # 1) drop_rate = 0 in training mode -> exact identity through the kernel.
    s0, v0 = gvp_dropout((s, v), 0.0, seed=42, training=True)
    s0 = jax.block_until_ready(s0)
    v0 = jax.block_until_ready(v0)
    assert jnp.array_equal(s0, s) and jnp.array_equal(v0, v)

    # 2) drop_rate = 0.25, training mode: structural property checks.
    p = 0.25
    scale = 1.0 / (1.0 - p)
    so, vo = gvp_dropout((s, v), p, seed=123, training=True)
    so = jax.block_until_ready(so)
    vo = jax.block_until_ready(vo)
    assert so.shape == s.shape and so.dtype == s.dtype
    assert vo.shape == v.shape and vo.dtype == v.dtype

    # scalar channels: each element is either 0 or x / (1 - p)
    kept_s = jnp.isclose(so, s * scale, rtol=1e-6, atol=1e-6)
    drop_s = (so == 0.0)
    assert bool(jnp.all(kept_s | drop_s))
    assert bool(jnp.any(kept_s)) and bool(jnp.any(drop_s))
    keep_rate = float(kept_s.mean())
    assert 0.5 < keep_rate < 0.95, keep_rate

    # vector channels: whole xyz channel kept (scaled) or dropped together
    kept_v = jnp.isclose(vo, v * scale, rtol=1e-6, atol=1e-6).all(-1)
    drop_v = (vo == 0.0).all(-1)
    assert bool(jnp.all(kept_v | drop_v))
    assert bool(jnp.any(kept_v)) and bool(jnp.any(drop_v))

    # 3) eval mode -> identity passthrough.
    se, ve = gvp_dropout((s, v), p, seed=0, training=False)
    assert se is s and ve is v

    # 4) single-tensor input path (scalar channels only, nn.Dropout branch).
    so2 = jax.block_until_ready(gvp_dropout(s, p, seed=7, training=True))
    kept2 = jnp.isclose(so2, s * scale, rtol=1e-6, atol=1e-6)
    assert bool(jnp.all(kept2 | (so2 == 0.0)))

    print("KERNEL_OK")
</pallas_src>

<mosaic_0001>
module attributes {stable_mosaic.version = 11 : i64} {
  func.func @_fused_dropout_kernel(%arg0: i32, %arg1: memref<1xi32, #tpu.memory_space<smem>>, %arg2: memref<1x32xi32, #tpu.memory_space<vmem>>, %arg3: memref<1x12xi32, #tpu.memory_space<vmem>>, %arg4: memref<16x32xf32, #tpu.memory_space<vmem>>, %arg5: memref<16x12xf32, #tpu.memory_space<vmem>>, %arg6: memref<16x32xf32, #tpu.memory_space<vmem>>, %arg7: memref<16x12xf32, #tpu.memory_space<vmem>>) attributes {dimension_semantics = [#tpu.dimension_semantics<parallel>], iteration_bounds = array<i64: 1>, scalar_prefetch = 1 : i64, scratch_operands = 0 : i64, tpu.core_type = #tpu.core_type<tc>, window_params = [{pipeline_mode = #tpu.pipeline_mode<synchronous>, transform_indices = @transform_0, window_bounds = array<i64: 1, 32>}, {pipeline_mode = #tpu.pipeline_mode<synchronous>, transform_indices = @transform_1, window_bounds = array<i64: 1, 12>}, {transform_indices = @transform_2, window_bounds = array<i64: 16, 32>}, {transform_indices = @transform_3, window_bounds = array<i64: 16, 12>}, {transform_indices = @transform_4, window_bounds = array<i64: 16, 32>}, {transform_indices = @transform_5, window_bounds = array<i64: 16, 12>}]} {
    %c16_i32 = arith.constant 16 : i32
    %0 = arith.muli %arg0, %c16_i32 : i32
    %c0 = arith.constant 0 : index
    %1 = memref.load %arg1[%c0] : memref<1xi32, #tpu.memory_space<smem>>
    %c0_0 = arith.constant 0 : index
    %c0_1 = arith.constant 0 : index
    %2 = vector.load %arg2[%c0_0, %c0_1] : memref<1x32xi32, #tpu.memory_space<vmem>>, vector<1x32xi32>
    %c608135816_i32 = arith.constant 608135816 : i32
    %3 = arith.xori %1, %c608135816_i32 : i32
    %4 = tpu.iota {dimensions = array<i32: 0>} : vector<16x32xi32>
    %5 = vector.broadcast %0 : i32 to vector<16x32xi32>
    %6 = arith.addi %4, %5 : vector<16x32xi32>
    %c-1640531535_i32 = arith.constant -1640531535 : i32
    %7 = vector.broadcast %c-1640531535_i32 : i32 to vector<16x32xi32>
    %8 = arith.muli %6, %7 : vector<16x32xi32>
    %c-2048144777_i32 = arith.constant -2048144777 : i32
    %9 = vector.broadcast %c-2048144777_i32 : i32 to vector<1x32xi32>
    %10 = arith.muli %2, %9 : vector<1x32xi32>
    %11 = vector.broadcast %10 : vector<1x32xi32> to vector<16x32xi32>
    %12 = arith.xori %8, %11 : vector<16x32xi32>
    %13 = vector.broadcast %3 : i32 to vector<16x32xi32>
    %14 = arith.xori %12, %13 : vector<16x32xi32>
    %c16_i32_2 = arith.constant 16 : i32
    %15 = vector.broadcast %c16_i32_2 : i32 to vector<16x32xi32>
    %16 = arith.shrui %14, %15 : vector<16x32xi32>
    %17 = arith.xori %14, %16 : vector<16x32xi32>
    %c-2048144789_i32 = arith.constant -2048144789 : i32
    %18 = vector.broadcast %c-2048144789_i32 : i32 to vector<16x32xi32>
    %19 = arith.muli %17, %18 : vector<16x32xi32>
    %c13_i32 = arith.constant 13 : i32
    %20 = vector.broadcast %c13_i32 : i32 to vector<16x32xi32>
    %21 = arith.shrui %19, %20 : vector<16x32xi32>
    %22 = arith.xori %19, %21 : vector<16x32xi32>
    %c-1028477387_i32 = arith.constant -1028477387 : i32
    %23 = vector.broadcast %c-1028477387_i32 : i32 to vector<16x32xi32>
    %24 = arith.muli %22, %23 : vector<16x32xi32>
    %c16_i32_3 = arith.constant 16 : i32
    %25 = vector.broadcast %c16_i32_3 : i32 to vector<16x32xi32>
    %26 = arith.shrui %24, %25 : vector<16x32xi32>
    %27 = arith.xori %24, %26 : vector<16x32xi32>
    %c8_i32 = arith.constant 8 : i32
    %28 = vector.broadcast %c8_i32 : i32 to vector<16x32xi32>
    %29 = arith.shrui %27, %28 : vector<16x32xi32>
    %c16777216_i32 = arith.constant 16777216 : i32
    %30 = vector.broadcast %c16777216_i32 : i32 to vector<16x32xi32>
    %31 = arith.cmpi ult, %29, %30 : vector<16x32xi32>
    %c0_4 = arith.constant 0 : index
    %c0_5 = arith.constant 0 : index
    %32 = vector.load %arg4[%c0_4, %c0_5] : memref<16x32xf32, #tpu.memory_space<vmem>>, vector<16x32xf32>
    %cst = arith.constant 1.000000e+00 : f32
    %33 = vector.broadcast %cst : f32 to vector<16x32xf32>
    %34 = arith.mulf %32, %33 : vector<16x32xf32>
    %cst_6 = arith.constant 0.000000e+00 : f32
    %35 = vector.broadcast %cst_6 : f32 to vector<16x32xf32>
    %36 = arith.select %31, %34, %35 : vector<16x32xi1>, vector<16x32xf32>
    %c0_7 = arith.constant 0 : index
    %c0_8 = arith.constant 0 : index
    %37 = vector.load %arg6[%c0_7, %c0_8] : memref<16x32xf32, #tpu.memory_space<vmem>>, vector<16x32xf32>
    tpu.vector_store %arg6[%c0_7, %c0_8], %36 {strides = array<i32>} : memref<16x32xf32, #tpu.memory_space<vmem>>, vector<16x32xf32>,
    %c0_9 = arith.constant 0 : index
    %c0_10 = arith.constant 0 : index
    %38 = vector.load %arg3[%c0_9, %c0_10] : memref<1x12xi32, #tpu.memory_space<vmem>>, vector<1x12xi32>
    %c-1209970333_i32 = arith.constant -1209970333 : i32
    %39 = arith.xori %1, %c-1209970333_i32 : i32
    %40 = tpu.iota {dimensions = array<i32: 0>} : vector<16x12xi32>
    %41 = vector.broadcast %0 : i32 to vector<16x12xi32>
    %42 = arith.addi %40, %41 : vector<16x12xi32>
    %c-1640531535_i32_11 = arith.constant -1640531535 : i32
    %43 = vector.broadcast %c-1640531535_i32_11 : i32 to vector<16x12xi32>
    %44 = arith.muli %42, %43 : vector<16x12xi32>
    %c-2048144777_i32_12 = arith.constant -2048144777 : i32
    %45 = vector.broadcast %c-2048144777_i32_12 : i32 to vector<1x12xi32>
    %46 = arith.muli %38, %45 : vector<1x12xi32>
    %47 = vector.broadcast %46 : vector<1x12xi32> to vector<16x12xi32>
    %48 = arith.xori %44, %47 : vector<16x12xi32>
    %49 = vector.broadcast %39 : i32 to vector<16x12xi32>
    %50 = arith.xori %48, %49 : vector<16x12xi32>
    %c16_i32_13 = arith.constant 16 : i32
    %51 = vector.broadcast %c16_i32_13 : i32 to vector<16x12xi32>
    %52 = arith.shrui %50, %51 : vector<16x12xi32>
    %53 = arith.xori %50, %52 : vector<16x12xi32>
    %c-2048144789_i32_14 = arith.constant -2048144789 : i32
    %54 = vector.broadcast %c-2048144789_i32_14 : i32 to vector<16x12xi32>
    %55 = arith.muli %53, %54 : vector<16x12xi32>
    %c13_i32_15 = arith.constant 13 : i32
    %56 = vector.broadcast %c13_i32_15 : i32 to vector<16x12xi32>
    %57 = arith.shrui %55, %56 : vector<16x12xi32>
    %58 = arith.xori %55, %57 : vector<16x12xi32>
    %c-1028477387_i32_16 = arith.constant -1028477387 : i32
    %59 = vector.broadcast %c-1028477387_i32_16 : i32 to vector<16x12xi32>
    %60 = arith.muli %58, %59 : vector<16x12xi32>
    %c16_i32_17 = arith.constant 16 : i32
    %61 = vector.broadcast %c16_i32_17 : i32 to vector<16x12xi32>
    %62 = arith.shrui %60, %61 : vector<16x12xi32>
    %63 = arith.xori %60, %62 : vector<16x12xi32>
    %c8_i32_18 = arith.constant 8 : i32
    %64 = vector.broadcast %c8_i32_18 : i32 to vector<16x12xi32>
    %65 = arith.shrui %63, %64 : vector<16x12xi32>
    %c16777216_i32_19 = arith.constant 16777216 : i32
    %66 = vector.broadcast %c16777216_i32_19 : i32 to vector<16x12xi32>
    %67 = arith.cmpi ult, %65, %66 : vector<16x12xi32>
    %c0_20 = arith.constant 0 : index
    %c0_21 = arith.constant 0 : index
    %68 = vector.load %arg5[%c0_20, %c0_21] : memref<16x12xf32, #tpu.memory_space<vmem>>, vector<16x12xf32>
    %cst_22 = arith.constant 1.000000e+00 : f32
    %69 = vector.broadcast %cst_22 : f32 to vector<16x12xf32>
    %70 = arith.mulf %68, %69 : vector<16x12xf32>
    %cst_23 = arith.constant 0.000000e+00 : f32
    %71 = vector.broadcast %cst_23 : f32 to vector<16x12xf32>
    %72 = arith.select %67, %70, %71 : vector<16x12xi1>, vector<16x12xf32>
    %c0_24 = arith.constant 0 : index
    %c0_25 = arith.constant 0 : index
    %73 = vector.load %arg7[%c0_24, %c0_25] : memref<16x12xf32, #tpu.memory_space<vmem>>, vector<16x12xf32>
    tpu.vector_store %arg7[%c0_24, %c0_25], %72 {strides = array<i32>} : memref<16x12xf32, #tpu.memory_space<vmem>>, vector<16x12xf32>,
    return
  }
  func.func @transform_0(%arg0: i32, %arg1: memref<1xi32, #tpu.memory_space<smem>>) -> (i32, i32) {
    %c0_i32 = arith.constant 0 : i32
    %c0_i32_0 = arith.constant 0 : i32
    %c0_i32_1 = arith.constant 0 : i32
    return %c0_i32, %c0_i32_0 : i32, i32
  }
  func.func @transform_1(%arg0: i32, %arg1: memref<1xi32, #tpu.memory_space<smem>>) -> (i32, i32) {
    %c0_i32 = arith.constant 0 : i32
    %c0_i32_0 = arith.constant 0 : i32
    %c0_i32_1 = arith.constant 0 : i32
    return %c0_i32, %c0_i32_0 : i32, i32
  }
  func.func @transform_2(%arg0: i32, %arg1: memref<1xi32, #tpu.memory_space<smem>>) -> (i32, i32) {
    %c0_i32 = arith.constant 0 : i32
    %c0_i32_0 = arith.constant 0 : i32
    return %arg0, %c0_i32 : i32, i32
  }
  func.func @transform_3(%arg0: i32, %arg1: memref<1xi32, #tpu.memory_space<smem>>) -> (i32, i32) {
    %c0_i32 = arith.constant 0 : i32
    %c0_i32_0 = arith.constant 0 : i32
    return %arg0, %c0_i32 : i32, i32
  }
  func.func @transform_4(%arg0: i32, %arg1: memref<1xi32, #tpu.memory_space<smem>>) -> (i32, i32) {
    %c0_i32 = arith.constant 0 : i32
    %c0_i32_0 = arith.constant 0 : i32
    return %arg0, %c0_i32 : i32, i32
  }
  func.func @transform_5(%arg0: i32, %arg1: memref<1xi32, #tpu.memory_space<smem>>) -> (i32, i32) {
    %c0_i32 = arith.constant 0 : i32
    %c0_i32_0 = arith.constant 0 : i32
    return %arg0, %c0_i32 : i32, i32
  }
}

</mosaic_0001>

<llo_original>
// kernel: tpu_custom_call.1
$region0: #{tpu_custom_call.1}
  #allocation0 [shape = 'u32[]', space=smem, size = 0x4, offset = 0x4, fixed_abs, tag = 'smem constant byte address 0x4 - core index']
  #allocation1 [shape = 'u32[144,128]{1,0:T(1,128)}', space=vmem, size = 0x12000, scoped, tag = 'internal scratch']
  #allocation2 [shape = 's32[1]{0}', space=sflag, size = 0x4, scoped, tag = 'scoped memory for tpu_custom_call.1']
  #allocation3 [shape = 's32[1]{0:T(128)S(6)}', space=smem, size = 0x200, scoped, tag = 'prefetched SMEM operand 0']
  %s0 = inlined_call_operand.<no memory space> [shape: s32[1], index: 0, kind: input, shape index: {}]
  %s1 = inlined_call_operand.vmem [shape: s32[1,32], index: 1, kind: input, shape index: {}]
  %s2 = inlined_call_operand.vmem [shape: s32[1,12], index: 2, kind: input, shape index: {}]
  %s3 = inlined_call_operand.hbm [shape: f32[16,32], index: 3, kind: input, shape index: {}]
  %s4 = inlined_call_operand.hbm [shape: f32[16,12], index: 4, kind: input, shape index: {}]
  %s5 = inlined_call_operand.hbm [shape: f32[16,32], index: 5, kind: output, shape index: {0}]
  %s6 = inlined_call_operand.hbm [shape: f32[16,12], index: 6, kind: output, shape index: {1}]
  %7 = xla_tuple %s5, %s6
  %s8 = sld [smem:[#allocation0]]
  $region42: #{tpu_custom_call.1} parent=0
    _
  %s10 = ssub.s32 1, %s8
  %s11 = scalar_select 0, %s10, %s8
  %12 = sst [smem:[#allocation3]] %s0
  $region1: #{tpu_custom_call.1} parent=0
    #allocation4 [shape = 'u8[8192]{0}', space=vmem, size = 0x2000, scoped, tag = 'input window, operand 3, single buffered']
    #allocation5 [shape = 's32[1]{0}', space=sflag, size = 0x4, scoped, tag = 'scoped memory for tpu_custom_call.1']
    #allocation6 [shape = 's32[1]{0}', space=sflag, size = 0x4, scoped, tag = 'scoped memory for tpu_custom_call.1']
    #allocation7 [shape = 'u8[8192]{0}', space=vmem, size = 0x2000, scoped, tag = 'input window, operand 4, single buffered']
    #allocation8 [shape = 's32[1]{0}', space=sflag, size = 0x4, scoped, tag = 'scoped memory for tpu_custom_call.1']
    #allocation9 [shape = 'u8[8192]{0}', space=vmem, size = 0x2000, scoped, tag = 'output window, operand 0, single buffered']
    #allocation10 [shape = 'u8[8192]{0}', space=vmem, size = 0x2000, scoped, tag = 'output window, operand 1, single buffered']
    #allocation11 [shape = 's32[1]{0}', space=sflag, size = 0x4, scoped, tag = 'scoped memory for tpu_custom_call.1']
    %13 = vsyncpa [#allocation5], 0
    %14 = vsyncpa [#allocation8], 0
    %15 = vsyncpa [#allocation6], 0
    %16 = vsyncpa [#allocation11], 0
    // Predicated region
    $region2: #{tpu_custom_call.1} parent=1 // pred_check
      _
    $region3: #{tpu_custom_call.1} parent=1 // pred_check_branch
      %18 = sbr.rel (0) target = $region5
    $region4: #{tpu_custom_call.1} parent=1 // pred_region
      _
    $region5: #{tpu_custom_call.1} parent=1 // pred_fallthru
      _
    // Predicated region
    $region6: #{tpu_custom_call.1} parent=1 // pred_check
      _
    $region7: #{tpu_custom_call.1} parent=1 // pred_check_branch
      %20 = sbr.rel (0) target = $region9
    $region8: #{tpu_custom_call.1} parent=1 // pred_region
      _
    $region9: #{tpu_custom_call.1} parent=1 // pred_fallthru
      _
    // Predicated region
    $region10: #{tpu_custom_call.1} parent=1 // pred_check
      _
    $region11: #{tpu_custom_call.1} parent=1 // pred_check_branch
      %22 = sbr.rel (0) target = $region13
    $region12: #{tpu_custom_call.1} parent=1 // pred_region
      %s24 = ssub.s32 256, 256
      %25 = vsyncadd [#allocation5], %s24
      %s26 = sshll.u32 [#allocation4], 4
      %s27 = int_to_ptr.vmem [resolvable:$true] %s26
      %32 = dma.hbm_to_vmem [thread:$0]  %s3, 256, %s27, [#allocation5], 128, 128, 8
    $region13: #{tpu_custom_call.1} parent=1 // pred_fallthru
      _
    // Predicated region
    $region14: #{tpu_custom_call.1} parent=1 // pred_check
      _
    $region15: #{tpu_custom_call.1} parent=1 // pred_check_branch
      %34 = sbr.rel (0) target = $region17
    $region16: #{tpu_custom_call.1} parent=1 // pred_region
      %s36 = ssub.s32 256, 256
      %37 = vsyncadd [#allocation8], %s36
      %s38 = sshll.u32 [#allocation7], 4
      %s39 = int_to_ptr.vmem [resolvable:$true] %s38
      %44 = dma.hbm_to_vmem [thread:$0]  %s4, 256, %s39, [#allocation8], 128, 128, 8
    $region17: #{tpu_custom_call.1} parent=1 // pred_fallthru
      _
    // Predicated region
    $region18: #{tpu_custom_call.1} parent=1 // pred_check
      _
    $region19: #{tpu_custom_call.1} parent=1 // pred_check_branch
      %46 = sbr.rel (0) target = $region21
    $region20: #{tpu_custom_call.1} parent=1 // pred_region
      %47 = dma.done [#allocation5], 256
    $region21: #{tpu_custom_call.1} parent=1 // pred_fallthru
      _
    // Predicated region
    $region22: #{tpu_custom_call.1} parent=1 // pred_check
      _
    $region23: #{tpu_custom_call.1} parent=1 // pred_check_branch
      %49 = sbr.rel (0) target = $region25
    $region24: #{tpu_custom_call.1} parent=1 // pred_region
      %50 = dma.done [#allocation8], 256
    $region25: #{tpu_custom_call.1} parent=1 // pred_fallthru
      _
    %s51 = smul.u32 0, 16
    %s52 = sld [smem:[#allocation3]]
    %v53 = vld [vmem:[%s1] sm:$0x1]
    %s54 = sxor.u32 %s52, 608135816
    %v55 = vlaneseq
    %v56 = vshrl.u32 %v55, 7
    %v57 = vadd.s32 %v56, 8
    %v58 = vstv %s51
    %v59 = vadd.s32 %v56, %v58
    %v60 = vadd.s32 %v57, %v58
    %v61 = vmul.u32 %v59, 2654435761
    %v62 = vmul.u32 %v60, 2654435761
    %v63 = vmul.u32 %v53, 2246822519
    %v64 = vlaneseq
    %v65 = vshrl.u32 %v64, 7
    %v66 = vsub.s32 0, %v65
    %v67 = vrot.slane %v63, %v66
    %v68 = vxor.u32 %v61, %v67
    %v69 = vxor.u32 %v62, %v67
    %v70 = vstv %s54
    %v71 = vxor.u32 %v68, %v70
    %v72 = vxor.u32 %v69, %v70
    %v73 = vshrl.u32 %v71, 16
    %v74 = vshrl.u32 %v72, 16
    %v75 = vxor.u32 %v71, %v73
    %v76 = vxor.u32 %v72, %v74
    %v77 = vmul.u32 %v75, 2246822507
    %v78 = vmul.u32 %v76, 2246822507
    %v79 = vshrl.u32 %v77, 13
    %v80 = vshrl.u32 %v78, 13
    %v81 = vxor.u32 %v77, %v79
    %v82 = vxor.u32 %v78, %v80
    %v83 = vmul.u32 %v81, 3266489909
    %v84 = vmul.u32 %v82, 3266489909
    %v85 = vshrl.u32 %v83, 16
    %v86 = vshrl.u32 %v84, 16
    %v87 = vxor.u32 %v83, %v85
    %v88 = vxor.u32 %v84, %v86
    %v89 = vshrl.u32 %v87, 8
    %v90 = vshrl.u32 %v88, 8
    %vm91 = vcmp.lt.u32.totalorder %v89, 16777216
    %vm92 = vcmp.lt.u32.totalorder %v90, 16777216
    %v93 = vld [vmem:[#allocation4] sm:$0xff]
    %v94 = vld [vmem:[#allocation4 + $0x8] sm:$0xff]
    %v95 = vsel %vm91, %v93, 0.0
    %v96 = vsel %vm92, %v94, 0.0
    %vm97 = vcmask 261120
    %98 = vst.msk [vmem:[#allocation9] sm:$0xff] %vm97, %v95
    %99 = vst.msk [vmem:[#allocation9 + $0x8] sm:$0xff] %vm97, %v96
    %v100 = vld [vmem:[%s2] sm:$0x1]
    %s101 = sxor.u32 %s52, 3084996963
    %v102 = vmul.u32 %v100, 2246822519
    %v103 = vlaneseq
    %v104 = vshrl.u32 %v103, 7
    %v105 = vsub.s32 0, %v104
    %v106 = vrot.slane %v102, %v105
    %v107 = vxor.u32 %v61, %v106
    %v108 = vxor.u32 %v62, %v106
    %v109 = vstv %s101
    %v110 = vxor.u32 %v107, %v109
    %v111 = vxor.u32 %v108, %v109
    %v112 = vshrl.u32 %v110, 16
    %v113 = vshrl.u32 %v111, 16
    %v114 = vxor.u32 %v110, %v112
    %v115 = vxor.u32 %v111, %v113
    %v116 = vmul.u32 %v114, 2246822507
    %v117 = vmul.u32 %v115, 2246822507
    %v118 = vshrl.u32 %v116, 13
    %v119 = vshrl.u32 %v117, 13
    %v120 = vxor.u32 %v116, %v118
    %v121 = vxor.u32 %v117, %v119
    %v122 = vmul.u32 %v120, 3266489909
    %v123 = vmul.u32 %v121, 3266489909
    %v124 = vshrl.u32 %v122, 16
    %v125 = vshrl.u32 %v123, 16
    %v126 = vxor.u32 %v122, %v124
    %v127 = vxor.u32 %v123, %v125
    %v128 = vshrl.u32 %v126, 8
    %v129 = vshrl.u32 %v127, 8
    %vm130 = vcmp.lt.u32.totalorder %v128, 16777216
    %vm131 = vcmp.lt.u32.totalorder %v129, 16777216
    %v132 = vld [vmem:[#allocation7] sm:$0xff]
    %v133 = vld [vmem:[#allocation7 + $0x8] sm:$0xff]
    %v134 = vsel %vm130, %v132, 0.0
    %v135 = vsel %vm131, %v133, 0.0
    %vm136 = vcmask 97280
    %137 = vst.msk [vmem:[#allocation10] sm:$0xff] %vm136, %v134
    %138 = vst.msk [vmem:[#allocation10 + $0x8] sm:$0xff] %vm136, %v135
    // Predicated region
    $region26: #{tpu_custom_call.1} parent=1 // pred_check
      _
    $region27: #{tpu_custom_call.1} parent=1 // pred_check_branch
      %140 = sbr.rel (0) target = $region29
    $region28: #{tpu_custom_call.1} parent=1 // pred_region
      %s142 = ssub.s32 256, 256
      %143 = vsyncadd [#allocation6], %s142
      %s144 = sshll.u32 [#allocation9], 4
      %s145 = int_to_ptr.vmem [resolvable:$true] %s144
      %150 = dma.vmem_to_hbm [thread:$0]  %s145, 256, %s5, [#allocation6], 128, 128, 8
    $region29: #{tpu_custom_call.1} parent=1 // pred_fallthru
      _
    // Predicated region
    $region30: #{tpu_custom_call.1} parent=1 // pred_check
      _
    $region31: #{tpu_custom_call.1} parent=1 // pred_check_branch
      %152 = sbr.rel (0) target = $region33
    $region32: #{tpu_custom_call.1} parent=1 // pred_region
      %s154 = ssub.s32 256, 256
      %155 = vsyncadd [#allocation11], %s154
      %s156 = sshll.u32 [#allocation10], 4
      %s157 = int_to_ptr.vmem [resolvable:$true] %s156
      %162 = dma.vmem_to_hbm [thread:$0]  %s157, 256, %s6, [#allocation11], 128, 128, 8
    $region33: #{tpu_custom_call.1} parent=1 // pred_fallthru
      _
    // Predicated region
    $region34: #{tpu_custom_call.1} parent=1 // pred_check
      _
    $region35: #{tpu_custom_call.1} parent=1 // pred_check_branch
      %164 = sbr.rel (0) target = $region37
    $region36: #{tpu_custom_call.1} parent=1 // pred_region
      %165 = dma.done [#allocation6], 256
    $region37: #{tpu_custom_call.1} parent=1 // pred_fallthru
      _
    // Predicated region
    $region38: #{tpu_custom_call.1} parent=1 // pred_check
      _
    $region39: #{tpu_custom_call.1} parent=1 // pred_check_branch
      %167 = sbr.rel (0) target = $region41
    $region40: #{tpu_custom_call.1} parent=1 // pred_region
      %168 = dma.done [#allocation11], 256
    $region41: #{tpu_custom_call.1} parent=1 // pred_fallthru
      _
    %169 = vsyncpa [#allocation5], 1
    %170 = vsyncpa [#allocation8], 1
    %171 = vsyncpa [#allocation6], 1
    %172 = vsyncpa [#allocation11], 1

</llo_original>
